<compile_context>
chip_gen: v7x
topology: tpu7x:2x2x1
jax: 0.10.0
libtpu: 0.0.40
codegen_flags: <defaults>
</compile_context>

<pallas_src>
import jax
import jax.numpy as jnp
from jax import lax
from jax.experimental import pallas as pl
from jax.experimental.pallas import tpu as pltpu


def conv_batch_norm(x_nchw, weight_oihw, bias, gamma, beta, eps=1e-5):
    """Forward matching nn.Conv2d(3x3, pad=1) -> nn.BatchNorm2d (training) -> ReLU.

    x_nchw: (N, Cin, H, W) f32 (PyTorch NCHW).  weight_oihw: (Cout, Cin, 3, 3) f32.
    Returns (N, Cout, H, W) f32.
    """
    del bias  # A per-channel constant before train-mode BN has zero effect on the output.
    N, Cin, H, W = x_nchw.shape
    Cout = weight_oihw.shape[0]
    CP = ((Cout + 127) // 128) * 128        # lane-dense channel padding
    K = 9 * Cin
    n_rows = N * H * W

    # ---- wrapper-side layout glue (tiny arrays; pure XLA, no HBM-heavy ops) ----
    # TODO(synk): accept NHWC / pre-extracted patches and emit NCHW-native lanes
    # from the kernel to remove this glue and the trailing transpose entirely.
    x_nhwc = jnp.transpose(x_nchw, (0, 2, 3, 1)).astype(jnp.float32)
    x_pad = jnp.pad(x_nhwc, ((0, 0), (1, 1), (1, 1), (0, 0)))
    taps = [x_pad[:, dy:dy + H, dx:dx + W, :] for dy in range(3) for dx in range(3)]
    patches = jnp.concatenate(taps, axis=-1).reshape(n_rows, K)       # (rows, 9*Cin)

    # weight (O,I,3,3) -> (ky,kx,cin,cout) -> (9*Cin, Cout), zero-pad Cout -> CP.
    w2 = jnp.transpose(weight_oihw, (2, 3, 1, 0)).reshape(K, Cout)
    w2 = jnp.pad(w2, ((0, 0), (0, CP - Cout))).astype(jnp.float32)    # (K, CP)

    gamma_p = jnp.pad(gamma.astype(jnp.float32), (0, CP - Cout))
    beta_p = jnp.pad(beta.astype(jnp.float32), (0, CP - Cout))
    gb = jnp.stack([gamma_p, beta_p], axis=0)                         # (2, CP)

    # ---- row tiling: as big as possible (whole batch in one grid step if small) ----
    MAX_TILE_ROWS = 2048
    rows_per_tile = n_rows
    if n_rows > MAX_TILE_ROWS:
        for cand in range(MAX_TILE_ROWS, 7, -1):
            if n_rows % cand == 0 and cand % 8 == 0:
                rows_per_tile = cand
                break
    n_tiles = n_rows // rows_per_tile
    inv_cnt = 1.0 / float(n_rows)

    def fused_kernel(patch_ref, w_ref, gb_ref, out_ref):
        # Phase A (every step): one im2col MXU matmul for this row tile, stashed
        # into the VMEM-resident output block.
        t = pl.program_id(0)
        r = patch_ref.shape[0]
        acc = jnp.dot(patch_ref[...], w_ref[...],
                      preferred_element_type=jnp.float32)             # (r, CP)
        row0 = pl.multiple_of(t * r, r)
        out_ref[pl.ds(row0, r), :] = acc

        # Phase B (last step only): batch-norm (train-mode batch stats, biased
        # variance via two-pass centered squares) + ReLU over the resident array.
        @pl.when(t == pl.num_programs(0) - 1)
        def _():
            conv = out_ref[...]                                       # (n_rows, CP)
            mean = jnp.sum(conv, axis=0, keepdims=True) * inv_cnt
            centered = conv - mean
            var = jnp.sum(centered * centered, axis=0, keepdims=True) * inv_cnt
            inv_std = lax.rsqrt(var + eps)
            scale = gb_ref[0:1, :] * inv_std
            out_ref[...] = jnp.maximum(centered * scale + gb_ref[1:2, :], 0.0)

    vmem_limit = 32 * 1024 * 1024  # safe on v5e/v6e (128 MiB) and v7x (64 MiB physical)

    y_flat = pl.pallas_call(
        fused_kernel,
        out_shape=jax.ShapeDtypeStruct((n_rows, CP), jnp.float32),
        grid_spec=pltpu.PrefetchScalarGridSpec(
            num_scalar_prefetch=0,
            grid=(n_tiles,),
            in_specs=[
                pl.BlockSpec((rows_per_tile, K), lambda t: (t, 0)),   # pipelined tile
                pl.BlockSpec((K, CP), lambda t: (0, 0)),              # resident weights
                pl.BlockSpec((2, CP), lambda t: (0, 0)),              # resident gamma/beta
            ],
            out_specs=pl.BlockSpec((n_rows, CP), lambda t: (0, 0)),   # VMEM-resident, one writeback
        ),
        compiler_params=pltpu.CompilerParams(
            dimension_semantics=("arbitrary",),                       # carries the accumulator
            vmem_limit_bytes=vmem_limit),
        cost_estimate=pl.CostEstimate(
            flops=2 * n_rows * K * CP,
            transcendentals=0,
            bytes_accessed=4 * (patches.size + w2.size + gb.size + n_rows * CP)),
    )(patches, w2, gb)

    # Glue: lane-dense (rows, CP) -> NCHW (drop channel padding).  Tiny (~16 KiB real).
    out_nhwc = y_flat[:, :Cout].reshape(N, H, W, Cout)
    return jnp.transpose(out_nhwc, (0, 3, 1, 2))


def _reference(x_nchw, weight_oihw, bias, gamma, beta, eps=1e-5):
    """Plain-JAX reference (conv+bias -> train-mode BN -> ReLU) for verification."""
    x_nhwc = jnp.transpose(x_nchw, (0, 2, 3, 1))
    w_hwio = jnp.transpose(weight_oihw, (2, 3, 1, 0))
    conv = lax.conv_general_dilated(
        x_nhwc, w_hwio, window_strides=(1, 1), padding=((1, 1), (1, 1)),
        dimension_numbers=("NHWC", "HWIO", "NHWC"),
    ) + bias.reshape(1, 1, 1, -1)
    mean = jnp.mean(conv, axis=(0, 1, 2), keepdims=True)
    var = jnp.mean((conv - mean) ** 2, axis=(0, 1, 2), keepdims=True)
    y = (conv - mean) * lax.rsqrt(var + eps)
    y = y * gamma.reshape(1, 1, 1, -1) + beta.reshape(1, 1, 1, -1)
    y = jnp.maximum(y, 0.0)
    return jnp.transpose(y, (0, 3, 1, 2))


if __name__ == "__main__":
    # Small shapes consistent with the module: batch=2, Cin=4, Cout=8, spatial=16.
    N, Cin, Cout, H, W = 2, 4, 8, 16, 16

    key = jax.random.PRNGKey(0)
    k_x, k_w, k_b, k_g, k_be = jax.random.split(key, 5)

    x = jax.random.normal(k_x, (N, Cin, H, W), dtype=jnp.float32)

    # Conv2d-like uniform fan-in init; non-trivial BN affine params.
    fan_in = Cin * 3 * 3
    bound = 1.0 / (fan_in ** 0.5)
    weight = jax.random.uniform(
        k_w, (Cout, Cin, 3, 3), minval=-bound, maxval=bound, dtype=jnp.float32)
    bias = jax.random.uniform(
        k_b, (Cout,), minval=-bound, maxval=bound, dtype=jnp.float32)
    gamma = jax.random.uniform(k_g, (Cout,), minval=0.5, maxval=1.5, dtype=jnp.float32)
    beta = 0.1 * jax.random.normal(k_be, (Cout,), dtype=jnp.float32)

    fn = jax.jit(conv_batch_norm)
    out = jax.block_until_ready(fn(x, weight, bias, gamma, beta))
    ref = jax.block_until_ready(_reference(x, weight, bias, gamma, beta))

    assert out.shape == (N, Cout, H, W)
    assert jnp.allclose(out, ref, rtol=1e-4, atol=1e-4), "mismatch vs reference"

    print("KERNEL_OK")
</pallas_src>

<mosaic_0001>
module attributes {stable_mosaic.version = 11 : i64} {
  func.func @fused_kernel(%arg0: i32, %arg1: memref<512x36xf32, #tpu.memory_space<vmem>>, %arg2: memref<36x128xf32, #tpu.memory_space<vmem>>, %arg3: memref<2x128xf32, #tpu.memory_space<vmem>>, %arg4: memref<512x128xf32, #tpu.memory_space<vmem>>) attributes {dimension_semantics = [#tpu.dimension_semantics<arbitrary>], iteration_bounds = array<i64: 1>, scalar_prefetch = 0 : i64, scratch_operands = 0 : i64, tpu.core_type = #tpu.core_type<tc>, window_params = [{transform_indices = @transform_0, window_bounds = array<i64: 512, 36>}, {pipeline_mode = #tpu.pipeline_mode<synchronous>, transform_indices = @transform_1, window_bounds = array<i64: 36, 128>}, {pipeline_mode = #tpu.pipeline_mode<synchronous>, transform_indices = @transform_2, window_bounds = array<i64: 2, 128>}, {pipeline_mode = #tpu.pipeline_mode<synchronous>, transform_indices = @transform_3, window_bounds = array<i64: 512, 128>}]} {
    %c0 = arith.constant 0 : index
    %c0_0 = arith.constant 0 : index
    %0 = vector.load %arg1[%c0, %c0_0] : memref<512x36xf32, #tpu.memory_space<vmem>>, vector<512x36xf32>
    %c0_1 = arith.constant 0 : index
    %c0_2 = arith.constant 0 : index
    %1 = vector.load %arg2[%c0_1, %c0_2] : memref<36x128xf32, #tpu.memory_space<vmem>>, vector<36x128xf32>
    %cst = arith.constant dense<0.000000e+00> : vector<512x128xf32>
    %2 = tpu.matmul %0, %1, %cst {dimension_numbers = #tpu.dot_dimension_numbers<[1], [0], [0], [1], [0, 0, 1, 1], [], []>} : vector<512x36xf32>, vector<36x128xf32>, vector<512x128xf32> -> vector<512x128xf32>
    %c512_i32 = arith.constant 512 : i32
    %3 = arith.muli %arg0, %c512_i32 : i32
    %4 = tpu.assume_multiple %3, 512 : i32
    %5 = arith.index_cast %4 : i32 to index
    %c0_3 = arith.constant 0 : index
    %6 = vector.load %arg4[%5, %c0_3] : memref<512x128xf32, #tpu.memory_space<vmem>>, vector<512x128xf32>
    tpu.vector_store %arg4[%5, %c0_3], %2 {strides = array<i32>} : memref<512x128xf32, #tpu.memory_space<vmem>>, vector<512x128xf32>,
    %c0_i32 = arith.constant 0 : i32
    %7 = arith.cmpi eq, %arg0, %c0_i32 : i32
    %8 = arith.extui %7 : i1 to i32
    %c0_i32_4 = arith.constant 0 : i32
    %9 = arith.cmpi ne, %8, %c0_i32_4 : i32
    scf.if %9 {
      %c0_5 = arith.constant 0 : index
      %c0_6 = arith.constant 0 : index
      %10 = vector.load %arg4[%c0_5, %c0_6] : memref<512x128xf32, #tpu.memory_space<vmem>>, vector<512x128xf32>
      %cst_7 = arith.constant dense<0.000000e+00> : vector<128xf32>
      %11 = vector.multi_reduction <add>, %10, %cst_7 [0] : vector<512x128xf32> to vector<128xf32>
      %12 = vector.shape_cast %11 : vector<128xf32> to vector<1x128xf32>
      %cst_8 = arith.constant 0.001953125 : f32
      %13 = vector.broadcast %cst_8 : f32 to vector<1x128xf32>
      %14 = arith.mulf %12, %13 : vector<1x128xf32>
      %15 = vector.broadcast %14 : vector<1x128xf32> to vector<512x128xf32>
      %16 = arith.subf %10, %15 : vector<512x128xf32>
      %17 = arith.mulf %16, %16 : vector<512x128xf32>
      %cst_9 = arith.constant dense<0.000000e+00> : vector<128xf32>
      %18 = vector.multi_reduction <add>, %17, %cst_9 [0] : vector<512x128xf32> to vector<128xf32>
      %19 = vector.shape_cast %18 : vector<128xf32> to vector<1x128xf32>
      %cst_10 = arith.constant 0.001953125 : f32
      %20 = vector.broadcast %cst_10 : f32 to vector<1x128xf32>
      %21 = arith.mulf %19, %20 : vector<1x128xf32>
      %cst_11 = arith.constant 9.99999974E-6 : f32
      %22 = vector.broadcast %cst_11 : f32 to vector<1x128xf32>
      %23 = arith.addf %21, %22 : vector<1x128xf32>
      %24 = math.rsqrt %23 : vector<1x128xf32>
      %c0_12 = arith.constant 0 : index
      %c0_13 = arith.constant 0 : index
      %25 = vector.load %arg3[%c0_12, %c0_13] : memref<2x128xf32, #tpu.memory_space<vmem>>, vector<1x128xf32>
      %26 = arith.mulf %25, %24 : vector<1x128xf32>
      %27 = vector.broadcast %26 : vector<1x128xf32> to vector<512x128xf32>
      %28 = arith.mulf %16, %27 : vector<512x128xf32>
      %c1 = arith.constant 1 : index
      %c0_14 = arith.constant 0 : index
      %29 = vector.load %arg3[%c1, %c0_14] : memref<2x128xf32, #tpu.memory_space<vmem>>, vector<1x128xf32>
      %30 = vector.broadcast %29 : vector<1x128xf32> to vector<512x128xf32>
      %31 = arith.addf %28, %30 : vector<512x128xf32>
      %cst_15 = arith.constant 0.000000e+00 : f32
      %32 = vector.broadcast %cst_15 : f32 to vector<512x128xf32>
      %33 = arith.maximumf %31, %32 : vector<512x128xf32>
      %c0_16 = arith.constant 0 : index
      %c0_17 = arith.constant 0 : index
      %34 = vector.load %arg4[%c0_16, %c0_17] : memref<512x128xf32, #tpu.memory_space<vmem>>, vector<512x128xf32>
      tpu.vector_store %arg4[%c0_16, %c0_17], %33 {strides = array<i32>} : memref<512x128xf32, #tpu.memory_space<vmem>>, vector<512x128xf32>,
    } else {
    }
    return
  }
  func.func @transform_0(%arg0: i32) -> (i32, i32) {
    %c0_i32 = arith.constant 0 : i32
    %c0_i32_0 = arith.constant 0 : i32
    return %arg0, %c0_i32 : i32, i32
  }
  func.func @transform_1(%arg0: i32) -> (i32, i32) {
    %c0_i32 = arith.constant 0 : i32
    %c0_i32_0 = arith.constant 0 : i32
    %c0_i32_1 = arith.constant 0 : i32
    return %c0_i32, %c0_i32_0 : i32, i32
  }
  func.func @transform_2(%arg0: i32) -> (i32, i32) {
    %c0_i32 = arith.constant 0 : i32
    %c0_i32_0 = arith.constant 0 : i32
    %c0_i32_1 = arith.constant 0 : i32
    return %c0_i32, %c0_i32_0 : i32, i32
  }
  func.func @transform_3(%arg0: i32) -> (i32, i32) {
    %c0_i32 = arith.constant 0 : i32
    %c0_i32_0 = arith.constant 0 : i32
    %c0_i32_1 = arith.constant 0 : i32
    return %c0_i32, %c0_i32_0 : i32, i32
  }
}

</mosaic_0001>

<llo_original>
// kernel: conv_batch_norm.1
$region0: #{conv_batch_norm.1}
  #allocation0 [shape = 'u32[]', space=smem, size = 0x4, offset = 0x4, fixed_abs, tag = 'smem constant byte address 0x4 - core index']
  #allocation1 [shape = 'u32[144,128]{1,0:T(1,128)}', space=vmem, size = 0x12000, scoped, tag = 'internal scratch']
  %s0 = inlined_call_operand.vmem [shape: f32[512,36], index: 0, kind: input, shape index: {}]
  %s1 = inlined_call_operand.vmem [shape: f32[36,128], index: 1, kind: input, shape index: {}]
  %s2 = inlined_call_operand.vmem [shape: f32[2,128], index: 2, kind: input, shape index: {}]
  %s3 = inlined_call_operand.vmem [shape: f32[512,128], index: 3, kind: output, shape index: {}]
  %s4 = sld [smem:[#allocation0]]
  $region26: #{conv_batch_norm.1} parent=0
    _
  %s6 = ssub.s32 1, %s4
  %s7 = scalar_select 0, %s6, %s4
  // Predicated region
  $region2: #{conv_batch_norm.1} parent=0 // pred_check
    _
  $region3: #{conv_batch_norm.1} parent=0 // pred_check_branch
    %9 = sbr.rel (0) target = $region5
  $region4: #{conv_batch_norm.1} parent=0 // pred_region
    _
  $region5: #{conv_batch_norm.1} parent=0 // pred_fallthru
    _
  // Predicated region
  $region6: #{conv_batch_norm.1} parent=0 // pred_check
    _
  $region7: #{conv_batch_norm.1} parent=0 // pred_check_branch
    %11 = sbr.rel (0) target = $region9
  $region8: #{conv_batch_norm.1} parent=0 // pred_region
    _
  $region9: #{conv_batch_norm.1} parent=0 // pred_fallthru
    _
  // Predicated region
  $region10: #{conv_batch_norm.1} parent=0 // pred_check
    _
  $region11: #{conv_batch_norm.1} parent=0 // pred_check_branch
    %13 = sbr.rel (0) target = $region13
  $region12: #{conv_batch_norm.1} parent=0 // pred_region
    _
  $region13: #{conv_batch_norm.1} parent=0 // pred_fallthru
    _
  %v14 = vld [vmem:[%s0] sm:$0xff]
  %v15 = vld [vmem:[%s0 + $0x8] sm:$0xff]
  %v16 = vld [vmem:[%s0 + $0x10] sm:$0xff]
  %v17 = vld [vmem:[%s0 + $0x18] sm:$0xff]
  %v18 = vld [vmem:[%s0 + $0x20] sm:$0xff]
  %v19 = vld [vmem:[%s0 + $0x28] sm:$0xff]
  %v20 = vld [vmem:[%s0 + $0x30] sm:$0xff]
  %v21 = vld [vmem:[%s0 + $0x38] sm:$0xff]
  %v22 = vld [vmem:[%s0 + $0x40] sm:$0xff]
  %v23 = vld [vmem:[%s0 + $0x48] sm:$0xff]
  %v24 = vld [vmem:[%s0 + $0x50] sm:$0xff]
  %v25 = vld [vmem:[%s0 + $0x58] sm:$0xff]
  %v26 = vld [vmem:[%s0 + $0x60] sm:$0xff]
  %v27 = vld [vmem:[%s0 + $0x68] sm:$0xff]
  %v28 = vld [vmem:[%s0 + $0x70] sm:$0xff]
  %v29 = vld [vmem:[%s0 + $0x78] sm:$0xff]
  %v30 = vld [vmem:[%s0 + $0x80] sm:$0xff]
  %v31 = vld [vmem:[%s0 + $0x88] sm:$0xff]
  %v32 = vld [vmem:[%s0 + $0x90] sm:$0xff]
  %v33 = vld [vmem:[%s0 + $0x98] sm:$0xff]
  %v34 = vld [vmem:[%s0 + $0xa0] sm:$0xff]
  %v35 = vld [vmem:[%s0 + $0xa8] sm:$0xff]
  %v36 = vld [vmem:[%s0 + $0xb0] sm:$0xff]
  %v37 = vld [vmem:[%s0 + $0xb8] sm:$0xff]
  %v38 = vld [vmem:[%s0 + $0xc0] sm:$0xff]
  %v39 = vld [vmem:[%s0 + $0xc8] sm:$0xff]
  %v40 = vld [vmem:[%s0 + $0xd0] sm:$0xff]
  %v41 = vld [vmem:[%s0 + $0xd8] sm:$0xff]
  %v42 = vld [vmem:[%s0 + $0xe0] sm:$0xff]
  %v43 = vld [vmem:[%s0 + $0xe8] sm:$0xff]
  %v44 = vld [vmem:[%s0 + $0xf0] sm:$0xff]
  %v45 = vld [vmem:[%s0 + $0xf8] sm:$0xff]
  %v46 = vld [vmem:[%s0 + $0x100] sm:$0xff]
  %v47 = vld [vmem:[%s0 + $0x108] sm:$0xff]
  %v48 = vld [vmem:[%s0 + $0x110] sm:$0xff]
  %v49 = vld [vmem:[%s0 + $0x118] sm:$0xff]
  %v50 = vld [vmem:[%s0 + $0x120] sm:$0xff]
  %v51 = vld [vmem:[%s0 + $0x128] sm:$0xff]
  %v52 = vld [vmem:[%s0 + $0x130] sm:$0xff]
  %v53 = vld [vmem:[%s0 + $0x138] sm:$0xff]
  %v54 = vld [vmem:[%s0 + $0x140] sm:$0xff]
  %v55 = vld [vmem:[%s0 + $0x148] sm:$0xff]
  %v56 = vld [vmem:[%s0 + $0x150] sm:$0xff]
  %v57 = vld [vmem:[%s0 + $0x158] sm:$0xff]
  %v58 = vld [vmem:[%s0 + $0x160] sm:$0xff]
  %v59 = vld [vmem:[%s0 + $0x168] sm:$0xff]
  %v60 = vld [vmem:[%s0 + $0x170] sm:$0xff]
  %v61 = vld [vmem:[%s0 + $0x178] sm:$0xff]
  %v62 = vld [vmem:[%s0 + $0x180] sm:$0xff]
  %v63 = vld [vmem:[%s0 + $0x188] sm:$0xff]
  %v64 = vld [vmem:[%s0 + $0x190] sm:$0xff]
  %v65 = vld [vmem:[%s0 + $0x198] sm:$0xff]
  %v66 = vld [vmem:[%s0 + $0x1a0] sm:$0xff]
  %v67 = vld [vmem:[%s0 + $0x1a8] sm:$0xff]
  %v68 = vld [vmem:[%s0 + $0x1b0] sm:$0xff]
  %v69 = vld [vmem:[%s0 + $0x1b8] sm:$0xff]
  %v70 = vld [vmem:[%s0 + $0x1c0] sm:$0xff]
  %v71 = vld [vmem:[%s0 + $0x1c8] sm:$0xff]
  %v72 = vld [vmem:[%s0 + $0x1d0] sm:$0xff]
  %v73 = vld [vmem:[%s0 + $0x1d8] sm:$0xff]
  %v74 = vld [vmem:[%s0 + $0x1e0] sm:$0xff]
  %v75 = vld [vmem:[%s0 + $0x1e8] sm:$0xff]
  %v76 = vld [vmem:[%s0 + $0x1f0] sm:$0xff]
  %v77 = vld [vmem:[%s0 + $0x1f8] sm:$0xff]
  %v78 = vld [vmem:[%s1] sm:$0xff]
  %v79 = vld [vmem:[%s1 + $0x8] sm:$0xff]
  %v80 = vld [vmem:[%s1 + $0x10] sm:$0xff]
  %v81 = vld [vmem:[%s1 + $0x18] sm:$0xff]
  %v82 = vld [vmem:[%s1 + $0x20] sm:$0xf]
  %vm83 = vcmask 293888
  %v85 = vsel %vm83, %v14, 0
  %v88 = vsel %vm83, %v15, 0
  %v91 = vsel %vm83, %v16, 0
  %v94 = vsel %vm83, %v17, 0
  %v97 = vsel %vm83, %v18, 0
  %v100 = vsel %vm83, %v19, 0
  %v103 = vsel %vm83, %v20, 0
  %v106 = vsel %vm83, %v21, 0
  %v109 = vsel %vm83, %v22, 0
  %v112 = vsel %vm83, %v23, 0
  %v115 = vsel %vm83, %v24, 0
  %v118 = vsel %vm83, %v25, 0
  %v121 = vsel %vm83, %v26, 0
  %v124 = vsel %vm83, %v27, 0
  %v127 = vsel %vm83, %v28, 0
  %v130 = vsel %vm83, %v29, 0
  %v133 = vsel %vm83, %v30, 0
  %v136 = vsel %vm83, %v31, 0
  %v139 = vsel %vm83, %v32, 0
  %v142 = vsel %vm83, %v33, 0
  %v145 = vsel %vm83, %v34, 0
  %v148 = vsel %vm83, %v35, 0
  %v151 = vsel %vm83, %v36, 0
  %v154 = vsel %vm83, %v37, 0
  %v157 = vsel %vm83, %v38, 0
  %v160 = vsel %vm83, %v39, 0
  %v163 = vsel %vm83, %v40, 0
  %v166 = vsel %vm83, %v41, 0
  %v169 = vsel %vm83, %v42, 0
  %v172 = vsel %vm83, %v43, 0
  %v175 = vsel %vm83, %v44, 0
  %v178 = vsel %vm83, %v45, 0
  %v181 = vsel %vm83, %v46, 0
  %v184 = vsel %vm83, %v47, 0
  %v187 = vsel %vm83, %v48, 0
  %v190 = vsel %vm83, %v49, 0
  %v193 = vsel %vm83, %v50, 0
  %v196 = vsel %vm83, %v51, 0
  %v199 = vsel %vm83, %v52, 0
  %v202 = vsel %vm83, %v53, 0
  %v205 = vsel %vm83, %v54, 0
  %v208 = vsel %vm83, %v55, 0
  %v211 = vsel %vm83, %v56, 0
  %v214 = vsel %vm83, %v57, 0
  %v217 = vsel %vm83, %v58, 0
  %v220 = vsel %vm83, %v59, 0
  %v223 = vsel %vm83, %v60, 0
  %v226 = vsel %vm83, %v61, 0
  %v229 = vsel %vm83, %v62, 0
  %v232 = vsel %vm83, %v63, 0
  %v235 = vsel %vm83, %v64, 0
  %v238 = vsel %vm83, %v65, 0
  %v241 = vsel %vm83, %v66, 0
  %v244 = vsel %vm83, %v67, 0
  %v247 = vsel %vm83, %v68, 0
  %v250 = vsel %vm83, %v69, 0
  %v253 = vsel %vm83, %v70, 0
  %v256 = vsel %vm83, %v71, 0
  %v259 = vsel %vm83, %v72, 0
  %v262 = vsel %vm83, %v73, 0
  %v265 = vsel %vm83, %v74, 0
  %v268 = vsel %vm83, %v75, 0
  %v271 = vsel %vm83, %v76, 0
  %v274 = vsel %vm83, %v77, 0
  %vm276 = vcmask 1043456
  %v278 = vsel %vm276, %v82, 0
  %280 = vmatprep.subr.mxu0 0.0
  %281 = vmatpush1.msra.mxu0 %v78
  %282 = vmatprep.subr.mxu0 0.0
  %283 = vmatpush1.msra.mxu0 %v79
  %284 = vmatprep.subr.mxu0 0.0
  %285 = vmatpush1.msra.mxu0 %v80
  %286 = vmatprep.subr.mxu0 0.0
  %287 = vmatpush1.msra.mxu0 %v81
  %288 = vmatprep.subr.mxu0 0.0
  %289 = vmatpush1.msra.mxu0 %v278
  %290 = vmatprep.subr.mxu0 0.0
  %291 = vmatpush1.msra.mxu0 0.0
  %292 = vmatprep.subr.mxu0 0.0
  %293 = vmatpush1.msra.mxu0 0.0
  %294 = vmatprep.subr.mxu0 0.0
  %295 = vmatpush1.msra.mxu0 0.0
  %296 = vmatprep.subr.mxu0 0.0
  %297 = vmatpush1.msra.mxu0 0.0
  %298 = vmatprep.subr.mxu0 0.0
  %299 = vmatpush1.msra.mxu0 0.0
  %300 = vmatprep.subr.mxu0 0.0
  %301 = vmatpush1.msra.mxu0 0.0
  %302 = vmatprep.subr.mxu0 0.0
  %303 = vmatpush1.msra.mxu0 0.0
  %304 = vmatprep.subr.mxu0 0.0
  %305 = vmatpush1.msra.mxu0 0.0
  %306 = vmatprep.subr.mxu0 0.0
  %307 = vmatpush1.msra.mxu0 0.0
  %308 = vmatprep.subr.mxu0 0.0
  %309 = vmatpush1.msra.mxu0 0.0
  %310 = vmatprep.subr.mxu0 0.0
  %311 = vmatpush1.msra.mxu0 0.0
  %312 = vmatprep.subr.mxu0 0.0
  %313 = vmatpush1.msra.mxu0 0.0
  %314 = vmatprep.subr.mxu0 0.0
  %315 = vmatpush1.msra.mxu0 0.0
  %316 = vmatprep.subr.mxu0 0.0
  %317 = vmatpush1.msra.mxu0 0.0
  %318 = vmatprep.subr.mxu0 0.0
  %319 = vmatpush1.msra.mxu0 0.0
  %320 = vmatprep.subr.mxu0 0.0
  %321 = vmatpush1.msra.mxu0 0.0
  %322 = vmatprep.subr.mxu0 0.0
  %323 = vmatpush1.msra.mxu0 0.0
  %324 = vmatprep.subr.mxu0 0.0
  %325 = vmatpush1.msra.mxu0 0.0
  %326 = vmatprep.subr.mxu0 0.0
  %327 = vmatpush1.msra.mxu0 0.0
  %328 = vmatprep.subr.mxu0 0.0
  %329 = vmatpush1.msra.mxu0 0.0
  %330 = vmatprep.subr.mxu0 0.0
  %331 = vmatpush1.msra.mxu0 0.0
  %332 = vmatprep.subr.mxu0 0.0
  %333 = vmatpush1.msra.mxu0 0.0
  %334 = vmatprep.subr.mxu0 0.0
  %335 = vmatpush1.msra.mxu0 0.0
  %336 = vmatprep.subr.mxu0 0.0
  %337 = vmatpush1.msra.mxu0 0.0
  %338 = vmatprep.subr.mxu0 0.0
  %339 = vmatpush1.msra.mxu0 0.0
  %340 = vmatprep.subr.mxu0 0.0
  %341 = vmatpush1.msra.mxu0 0.0
  %342 = vmatprep.subr.mxu0 0.0
  %343 = vmatpush1.msra.mxu0 0.0
  %344 = vmatprep.mubr.f32.mxu0 0.0
  %345 = vmatmul.mubr.f32.gmra.mrb[0].mxu0 %v85
  %v346 = vpop.f32.mrb[0].mxu0
  %v347 = vadd.f32 0.0, %v346
  %v348 = vpop.f32.mrb[0].mxu0
  %349 = vmatprep.mubr.f32.mxu0 0.0
  %350 = vmatmul.mubr.f32.gmra.mrb[0].mxu0 %v88
  %v351 = vpop.f32.mrb[0].mxu0
  %v352 = vadd.f32 0.0, %v351
  %v353 = vpop.f32.mrb[0].mxu0
  %354 = vmatprep.mubr.f32.mxu0 0.0
  %355 = vmatmul.mubr.f32.gmra.mrb[0].mxu0 %v91
  %v356 = vpop.f32.mrb[0].mxu0
  %v357 = vadd.f32 0.0, %v356
  %v358 = vpop.f32.mrb[0].mxu0
  %359 = vmatprep.mubr.f32.mxu0 0.0
  %360 = vmatmul.mubr.f32.gmra.mrb[0].mxu0 %v94
  %v361 = vpop.f32.mrb[0].mxu0
  %v362 = vadd.f32 0.0, %v361
  %v363 = vpop.f32.mrb[0].mxu0
  %364 = vmatprep.mubr.f32.mxu0 0.0
  %365 = vmatmul.mubr.f32.gmra.mrb[0].mxu0 %v97
  %v366 = vpop.f32.mrb[0].mxu0
  %v367 = vadd.f32 0.0, %v366
  %v368 = vpop.f32.mrb[0].mxu0
  %369 = vmatprep.mubr.f32.mxu0 0.0
  %370 = vmatmul.mubr.f32.gmra.mrb[0].mxu0 %v100
  %v371 = vpop.f32.mrb[0].mxu0
  %v372 = vadd.f32 0.0, %v371
  %v373 = vpop.f32.mrb[0].mxu0
  %374 = vmatprep.mubr.f32.mxu0 0.0
  %375 = vmatmul.mubr.f32.gmra.mrb[0].mxu0 %v103
  %v376 = vpop.f32.mrb[0].mxu0
  %v377 = vadd.f32 0.0, %v376
  %v378 = vpop.f32.mrb[0].mxu0
  %379 = vmatprep.mubr.f32.mxu0 0.0
  %380 = vmatmul.mubr.f32.gmra.mrb[0].mxu0 %v106
  %v381 = vpop.f32.mrb[0].mxu0
  %v382 = vadd.f32 0.0, %v381
  %v383 = vpop.f32.mrb[0].mxu0
  %384 = vmatprep.mubr.f32.mxu0 0.0
  %385 = vmatmul.mubr.f32.gmra.mrb[0].mxu0 %v109
  %v386 = vpop.f32.mrb[0].mxu0
  %v387 = vadd.f32 0.0, %v386
  %v388 = vpop.f32.mrb[0].mxu0
  %389 = vmatprep.mubr.f32.mxu0 0.0
  %390 = vmatmul.mubr.f32.gmra.mrb[0].mxu0 %v112
  %v391 = vpop.f32.mrb[0].mxu0
  %v392 = vadd.f32 0.0, %v391
  %v393 = vpop.f32.mrb[0].mxu0
  %394 = vmatprep.mubr.f32.mxu0 0.0
  %395 = vmatmul.mubr.f32.gmra.mrb[0].mxu0 %v115
  %v396 = vpop.f32.mrb[0].mxu0
  %v397 = vadd.f32 0.0, %v396
  %v398 = vpop.f32.mrb[0].mxu0
  %399 = vmatprep.mubr.f32.mxu0 0.0
  %400 = vmatmul.mubr.f32.gmra.mrb[0].mxu0 %v118
  %v401 = vpop.f32.mrb[0].mxu0
  %v402 = vadd.f32 0.0, %v401
  %v403 = vpop.f32.mrb[0].mxu0
  %404 = vmatprep.mubr.f32.mxu0 0.0
  %405 = vmatmul.mubr.f32.gmra.mrb[0].mxu0 %v121
  %v406 = vpop.f32.mrb[0].mxu0
  %v407 = vadd.f32 0.0, %v406
  %v408 = vpop.f32.mrb[0].mxu0
  %409 = vmatprep.mubr.f32.mxu0 0.0
  %410 = vmatmul.mubr.f32.gmra.mrb[0].mxu0 %v124
  %v411 = vpop.f32.mrb[0].mxu0
  %v412 = vadd.f32 0.0, %v411
  %v413 = vpop.f32.mrb[0].mxu0
  %414 = vmatprep.mubr.f32.mxu0 0.0
  %415 = vmatmul.mubr.f32.gmra.mrb[0].mxu0 %v127
  %v416 = vpop.f32.mrb[0].mxu0
  %v417 = vadd.f32 0.0, %v416
  %v418 = vpop.f32.mrb[0].mxu0
  %419 = vmatprep.mubr.f32.mxu0 0.0
  %420 = vmatmul.mubr.f32.gmra.mrb[0].mxu0 %v130
  %v421 = vpop.f32.mrb[0].mxu0
  %v422 = vadd.f32 0.0, %v421
  %v423 = vpop.f32.mrb[0].mxu0
  %424 = vmatprep.mubr.f32.mxu0 0.0
  %425 = vmatmul.mubr.f32.gmra.mrb[0].mxu0 %v133
  %v426 = vpop.f32.mrb[0].mxu0
  %v427 = vadd.f32 0.0, %v426
  %v428 = vpop.f32.mrb[0].mxu0
  %429 = vmatprep.mubr.f32.mxu0 0.0
  %430 = vmatmul.mubr.f32.gmra.mrb[0].mxu0 %v136
  %v431 = vpop.f32.mrb[0].mxu0
  %v432 = vadd.f32 0.0, %v431
  %v433 = vpop.f32.mrb[0].mxu0
  %434 = vmatprep.mubr.f32.mxu0 0.0
  %435 = vmatmul.mubr.f32.gmra.mrb[0].mxu0 %v139
  %v436 = vpop.f32.mrb[0].mxu0
  %v437 = vadd.f32 0.0, %v436
  %v438 = vpop.f32.mrb[0].mxu0
  %439 = vmatprep.mubr.f32.mxu0 0.0
  %440 = vmatmul.mubr.f32.gmra.mrb[0].mxu0 %v142
  %v441 = vpop.f32.mrb[0].mxu0
  %v442 = vadd.f32 0.0, %v441
  %v443 = vpop.f32.mrb[0].mxu0
  %444 = vmatprep.mubr.f32.mxu0 0.0
  %445 = vmatmul.mubr.f32.gmra.mrb[0].mxu0 %v145
  %v446 = vpop.f32.mrb[0].mxu0
  %v447 = vadd.f32 0.0, %v446
  %v448 = vpop.f32.mrb[0].mxu0
  %449 = vmatprep.mubr.f32.mxu0 0.0
  %450 = vmatmul.mubr.f32.gmra.mrb[0].mxu0 %v148
  %v451 = vpop.f32.mrb[0].mxu0
  %v452 = vadd.f32 0.0, %v451
  %v453 = vpop.f32.mrb[0].mxu0
  %454 = vmatprep.mubr.f32.mxu0 0.0
  %455 = vmatmul.mubr.f32.gmra.mrb[0].mxu0 %v151
  %v456 = vpop.f32.mrb[0].mxu0
  %v457 = vadd.f32 0.0, %v456
  %v458 = vpop.f32.mrb[0].mxu0
  %459 = vmatprep.mubr.f32.mxu0 0.0
  %460 = vmatmul.mubr.f32.gmra.mrb[0].mxu0 %v154
  %v461 = vpop.f32.mrb[0].mxu0
  %v462 = vadd.f32 0.0, %v461
  %v463 = vpop.f32.mrb[0].mxu0
  %464 = vmatprep.mubr.f32.mxu0 0.0
  %465 = vmatmul.mubr.f32.gmra.mrb[0].mxu0 %v157
  %v466 = vpop.f32.mrb[0].mxu0
  %v467 = vadd.f32 0.0, %v466
  %v468 = vpop.f32.mrb[0].mxu0
  %469 = vmatprep.mubr.f32.mxu0 0.0
  %470 = vmatmul.mubr.f32.gmra.mrb[0].mxu0 %v160
  %v471 = vpop.f32.mrb[0].mxu0
  %v472 = vadd.f32 0.0, %v471
  %v473 = vpop.f32.mrb[0].mxu0
  %474 = vmatprep.mubr.f32.mxu0 0.0
  %475 = vmatmul.mubr.f32.gmra.mrb[0].mxu0 %v163
  %v476 = vpop.f32.mrb[0].mxu0
  %v477 = vadd.f32 0.0, %v476
  %v478 = vpop.f32.mrb[0].mxu0
  %479 = vmatprep.mubr.f32.mxu0 0.0
  %480 = vmatmul.mubr.f32.gmra.mrb[0].mxu0 %v166
  %v481 = vpop.f32.mrb[0].mxu0
  %v482 = vadd.f32 0.0, %v481
  %v483 = vpop.f32.mrb[0].mxu0
  %484 = vmatprep.mubr.f32.mxu0 0.0
  %485 = vmatmul.mubr.f32.gmra.mrb[0].mxu0 %v169
  %v486 = vpop.f32.mrb[0].mxu0
  %v487 = vadd.f32 0.0, %v486
  %v488 = vpop.f32.mrb[0].mxu0
  %489 = vmatprep.mubr.f32.mxu0 0.0
  %490 = vmatmul.mubr.f32.gmra.mrb[0].mxu0 %v172
  %v491 = vpop.f32.mrb[0].mxu0
  %v492 = vadd.f32 0.0, %v491
  %v493 = vpop.f32.mrb[0].mxu0
  %494 = vmatprep.mubr.f32.mxu0 0.0
  %495 = vmatmul.mubr.f32.gmra.mrb[0].mxu0 %v175
  %v496 = vpop.f32.mrb[0].mxu0
  %v497 = vadd.f32 0.0, %v496
  %v498 = vpop.f32.mrb[0].mxu0
  %499 = vmatprep.mubr.f32.mxu0 0.0
  %500 = vmatmul.mubr.f32.gmra.mrb[0].mxu0 %v178
  %v501 = vpop.f32.mrb[0].mxu0
  %v502 = vadd.f32 0.0, %v501
  %v503 = vpop.f32.mrb[0].mxu0
  %504 = vmatprep.mubr.f32.mxu0 0.0
  %505 = vmatmul.mubr.f32.gmra.mrb[0].mxu0 %v181
  %v506 = vpop.f32.mrb[0].mxu0
  %v507 = vadd.f32 0.0, %v506
  %v508 = vpop.f32.mrb[0].mxu0
  %509 = vmatprep.mubr.f32.mxu0 0.0
  %510 = vmatmul.mubr.f32.gmra.mrb[0].mxu0 %v184
  %v511 = vpop.f32.mrb[0].mxu0
  %v512 = vadd.f32 0.0, %v511
  %v513 = vpop.f32.mrb[0].mxu0
  %514 = vmatprep.mubr.f32.mxu0 0.0
  %515 = vmatmul.mubr.f32.gmra.mrb[0].mxu0 %v187
  %v516 = vpop.f32.mrb[0].mxu0
  %v517 = vadd.f32 0.0, %v516
  %v518 = vpop.f32.mrb[0].mxu0
  %519 = vmatprep.mubr.f32.mxu0 0.0
  %520 = vmatmul.mubr.f32.gmra.mrb[0].mxu0 %v190
  %v521 = vpop.f32.mrb[0].mxu0
  %v522 = vadd.f32 0.0, %v521
  %v523 = vpop.f32.mrb[0].mxu0
  %524 = vmatprep.mubr.f32.mxu0 0.0
  %525 = vmatmul.mubr.f32.gmra.mrb[0].mxu0 %v193
  %v526 = vpop.f32.mrb[0].mxu0
  %v527 = vadd.f32 0.0, %v526
  %v528 = vpop.f32.mrb[0].mxu0
  %529 = vmatprep.mubr.f32.mxu0 0.0
  %530 = vmatmul.mubr.f32.gmra.mrb[0].mxu0 %v196
  %v531 = vpop.f32.mrb[0].mxu0
  %v532 = vadd.f32 0.0, %v531
  %v533 = vpop.f32.mrb[0].mxu0
  %534 = vmatprep.mubr.f32.mxu0 0.0
  %535 = vmatmul.mubr.f32.gmra.mrb[0].mxu0 %v199
  %v536 = vpop.f32.mrb[0].mxu0
  %v537 = vadd.f32 0.0, %v536
  %v538 = vpop.f32.mrb[0].mxu0
  %539 = vmatprep.mubr.f32.mxu0 0.0
  %540 = vmatmul.mubr.f32.gmra.mrb[0].mxu0 %v202
  %v541 = vpop.f32.mrb[0].mxu0
  %v542 = vadd.f32 0.0, %v541
  %v543 = vpop.f32.mrb[0].mxu0
  %544 = vmatprep.mubr.f32.mxu0 0.0
  %545 = vmatmul.mubr.f32.gmra.mrb[0].mxu0 %v205
  %v546 = vpop.f32.mrb[0].mxu0
  %v547 = vadd.f32 0.0, %v546
  %v548 = vpop.f32.mrb[0].mxu0
  %549 = vmatprep.mubr.f32.mxu0 0.0
  %550 = vmatmul.mubr.f32.gmra.mrb[0].mxu0 %v208
  %v551 = vpop.f32.mrb[0].mxu0
  %v552 = vadd.f32 0.0, %v551
  %v553 = vpop.f32.mrb[0].mxu0
  %554 = vmatprep.mubr.f32.mxu0 0.0
  %555 = vmatmul.mubr.f32.gmra.mrb[0].mxu0 %v211
  %v556 = vpop.f32.mrb[0].mxu0
  %v557 = vadd.f32 0.0, %v556
  %v558 = vpop.f32.mrb[0].mxu0
  %559 = vmatprep.mubr.f32.mxu0 0.0
  %560 = vmatmul.mubr.f32.gmra.mrb[0].mxu0 %v214
  %v561 = vpop.f32.mrb[0].mxu0
  %v562 = vadd.f32 0.0, %v561
  %v563 = vpop.f32.mrb[0].mxu0
  %564 = vmatprep.mubr.f32.mxu0 0.0
  %565 = vmatmul.mubr.f32.gmra.mrb[0].mxu0 %v217
  %v566 = vpop.f32.mrb[0].mxu0
  %v567 = vadd.f32 0.0, %v566
  %v568 = vpop.f32.mrb[0].mxu0
  %569 = vmatprep.mubr.f32.mxu0 0.0
  %570 = vmatmul.mubr.f32.gmra.mrb[0].mxu0 %v220
  %v571 = vpop.f32.mrb[0].mxu0
  %v572 = vadd.f32 0.0, %v571
  %v573 = vpop.f32.mrb[0].mxu0
  %574 = vmatprep.mubr.f32.mxu0 0.0
  %575 = vmatmul.mubr.f32.gmra.mrb[0].mxu0 %v223
  %v576 = vpop.f32.mrb[0].mxu0
  %v577 = vadd.f32 0.0, %v576
  %v578 = vpop.f32.mrb[0].mxu0
  %579 = vmatprep.mubr.f32.mxu0 0.0
  %580 = vmatmul.mubr.f32.gmra.mrb[0].mxu0 %v226
  %v581 = vpop.f32.mrb[0].mxu0
  %v582 = vadd.f32 0.0, %v581
  %v583 = vpop.f32.mrb[0].mxu0
  %584 = vmatprep.mubr.f32.mxu0 0.0
  %585 = vmatmul.mubr.f32.gmra.mrb[0].mxu0 %v229
  %v586 = vpop.f32.mrb[0].mxu0
  %v587 = vadd.f32 0.0, %v586
  %v588 = vpop.f32.mrb[0].mxu0
  %589 = vmatprep.mubr.f32.mxu0 0.0
  %590 = vmatmul.mubr.f32.gmra.mrb[0].mxu0 %v232
  %v591 = vpop.f32.mrb[0].mxu0
  %v592 = vadd.f32 0.0, %v591
  %v593 = vpop.f32.mrb[0].mxu0
  %594 = vmatprep.mubr.f32.mxu0 0.0
  %595 = vmatmul.mubr.f32.gmra.mrb[0].mxu0 %v235
  %v596 = vpop.f32.mrb[0].mxu0
  %v597 = vadd.f32 0.0, %v596
  %v598 = vpop.f32.mrb[0].mxu0
  %599 = vmatprep.mubr.f32.mxu0 0.0
  %600 = vmatmul.mubr.f32.gmra.mrb[0].mxu0 %v238
  %v601 = vpop.f32.mrb[0].mxu0
  %v602 = vadd.f32 0.0, %v601
  %v603 = vpop.f32.mrb[0].mxu0
  %604 = vmatprep.mubr.f32.mxu0 0.0
  %605 = vmatmul.mubr.f32.gmra.mrb[0].mxu0 %v241
  %v606 = vpop.f32.mrb[0].mxu0
  %v607 = vadd.f32 0.0, %v606
  %v608 = vpop.f32.mrb[0].mxu0
  %609 = vmatprep.mubr.f32.mxu0 0.0
  %610 = vmatmul.mubr.f32.gmra.mrb[0].mxu0 %v244
  %v611 = vpop.f32.mrb[0].mxu0
  %v612 = vadd.f32 0.0, %v611
  %v613 = vpop.f32.mrb[0].mxu0
  %614 = vmatprep.mubr.f32.mxu0 0.0
  %615 = vmatmul.mubr.f32.gmra.mrb[0].mxu0 %v247
  %v616 = vpop.f32.mrb[0].mxu0
  %v617 = vadd.f32 0.0, %v616
  %v618 = vpop.f32.mrb[0].mxu0
  %619 = vmatprep.mubr.f32.mxu0 0.0
  %620 = vmatmul.mubr.f32.gmra.mrb[0].mxu0 %v250
  %v621 = vpop.f32.mrb[0].mxu0
  %v622 = vadd.f32 0.0, %v621
  %v623 = vpop.f32.mrb[0].mxu0
  %624 = vmatprep.mubr.f32.mxu0 0.0
  %625 = vmatmul.mubr.f32.gmra.mrb[0].mxu0 %v253
  %v626 = vpop.f32.mrb[0].mxu0
  %v627 = vadd.f32 0.0, %v626
  %v628 = vpop.f32.mrb[0].mxu0
  %629 = vmatprep.mubr.f32.mxu0 0.0
  %630 = vmatmul.mubr.f32.gmra.mrb[0].mxu0 %v256
  %v631 = vpop.f32.mrb[0].mxu0
  %v632 = vadd.f32 0.0, %v631
  %v633 = vpop.f32.mrb[0].mxu0
  %634 = vmatprep.mubr.f32.mxu0 0.0
  %635 = vmatmul.mubr.f32.gmra.mrb[0].mxu0 %v259
  %v636 = vpop.f32.mrb[0].mxu0
  %v637 = vadd.f32 0.0, %v636
  %v638 = vpop.f32.mrb[0].mxu0
  %639 = vmatprep.mubr.f32.mxu0 0.0
  %640 = vmatmul.mubr.f32.gmra.mrb[0].mxu0 %v262
  %v641 = vpop.f32.mrb[0].mxu0
  %v642 = vadd.f32 0.0, %v641
  %v643 = vpop.f32.mrb[0].mxu0
  %644 = vmatprep.mubr.f32.mxu0 0.0
  %645 = vmatmul.mubr.f32.gmra.mrb[0].mxu0 %v265
  %v646 = vpop.f32.mrb[0].mxu0
  %v647 = vadd.f32 0.0, %v646
  %v648 = vpop.f32.mrb[0].mxu0
  %649 = vmatprep.mubr.f32.mxu0 0.0
  %650 = vmatmul.mubr.f32.gmra.mrb[0].mxu0 %v268
  %v651 = vpop.f32.mrb[0].mxu0
  %v652 = vadd.f32 0.0, %v651
  %v653 = vpop.f32.mrb[0].mxu0
  %654 = vmatprep.mubr.f32.mxu0 0.0
  %655 = vmatmul.mubr.f32.gmra.mrb[0].mxu0 %v271
  %v656 = vpop.f32.mrb[0].mxu0
  %v657 = vadd.f32 0.0, %v656
  %v658 = vpop.f32.mrb[0].mxu0
  %659 = vmatprep.mubr.f32.mxu0 0.0
  %660 = vmatmul.mubr.f32.gmra.mrb[0].mxu0 %v274
  %v661 = vpop.f32.mrb[0].mxu0
  %v662 = vadd.f32 0.0, %v661
  %v663 = vpop.f32.mrb[0].mxu0
  %664 = vdwg.mxu0
  %s665 = smul.u32 0, 512
  %s666 = scalar_lea.vmem %s3, %s665
  %667 = vst [vmem:[%s666] sm:$0xff] %v347
  %668 = vst [vmem:[%s666 + $0x8] sm:$0xff] %v352
  %669 = vst [vmem:[%s666 + $0x10] sm:$0xff] %v357
  %670 = vst [vmem:[%s666 + $0x18] sm:$0xff] %v362
  %671 = vst [vmem:[%s666 + $0x20] sm:$0xff] %v367
  %672 = vst [vmem:[%s666 + $0x28] sm:$0xff] %v372
  %673 = vst [vmem:[%s666 + $0x30] sm:$0xff] %v377
  %674 = vst [vmem:[%s666 + $0x38] sm:$0xff] %v382
  %675 = vst [vmem:[%s666 + $0x40] sm:$0xff] %v387
  %676 = vst [vmem:[%s666 + $0x48] sm:$0xff] %v392
  %677 = vst [vmem:[%s666 + $0x50] sm:$0xff] %v397
  %678 = vst [vmem:[%s666 + $0x58] sm:$0xff] %v402
  %679 = vst [vmem:[%s666 + $0x60] sm:$0xff] %v407
  %680 = vst [vmem:[%s666 + $0x68] sm:$0xff] %v412
  %681 = vst [vmem:[%s666 + $0x70] sm:$0xff] %v417
  %682 = vst [vmem:[%s666 + $0x78] sm:$0xff] %v422
  %683 = vst [vmem:[%s666 + $0x80] sm:$0xff] %v427
  %684 = vst [vmem:[%s666 + $0x88] sm:$0xff] %v432
  %685 = vst [vmem:[%s666 + $0x90] sm:$0xff] %v437
  %686 = vst [vmem:[%s666 + $0x98] sm:$0xff] %v442
  %687 = vst [vmem:[%s666 + $0xa0] sm:$0xff] %v447
  %688 = vst [vmem:[%s666 + $0xa8] sm:$0xff] %v452
  %689 = vst [vmem:[%s666 + $0xb0] sm:$0xff] %v457
  %690 = vst [vmem:[%s666 + $0xb8] sm:$0xff] %v462
  %691 = vst [vmem:[%s666 + $0xc0] sm:$0xff] %v467
  %692 = vst [vmem:[%s666 + $0xc8] sm:$0xff] %v472
  %693 = vst [vmem:[%s666 + $0xd0] sm:$0xff] %v477
  %694 = vst [vmem:[%s666 + $0xd8] sm:$0xff] %v482
  %695 = vst [vmem:[%s666 + $0xe0] sm:$0xff] %v487
  %696 = vst [vmem:[%s666 + $0xe8] sm:$0xff] %v492
  %697 = vst [vmem:[%s666 + $0xf0] sm:$0xff] %v497
  %698 = vst [vmem:[%s666 + $0xf8] sm:$0xff] %v502
  %699 = vst [vmem:[%s666 + $0x100] sm:$0xff] %v507
  %700 = vst [vmem:[%s666 + $0x108] sm:$0xff] %v512
  %701 = vst [vmem:[%s666 + $0x110] sm:$0xff] %v517
  %702 = vst [vmem:[%s666 + $0x118] sm:$0xff] %v522
  %703 = vst [vmem:[%s666 + $0x120] sm:$0xff] %v527
  %704 = vst [vmem:[%s666 + $0x128] sm:$0xff] %v532
  %705 = vst [vmem:[%s666 + $0x130] sm:$0xff] %v537
  %706 = vst [vmem:[%s666 + $0x138] sm:$0xff] %v542
  %707 = vst [vmem:[%s666 + $0x140] sm:$0xff] %v547
  %708 = vst [vmem:[%s666 + $0x148] sm:$0xff] %v552
  %709 = vst [vmem:[%s666 + $0x150] sm:$0xff] %v557
  %710 = vst [vmem:[%s666 + $0x158] sm:$0xff] %v562
  %711 = vst [vmem:[%s666 + $0x160] sm:$0xff] %v567
  %712 = vst [vmem:[%s666 + $0x168] sm:$0xff] %v572
  %713 = vst [vmem:[%s666 + $0x170] sm:$0xff] %v577
  %714 = vst [vmem:[%s666 + $0x178] sm:$0xff] %v582
  %715 = vst [vmem:[%s666 + $0x180] sm:$0xff] %v587
  %716 = vst [vmem:[%s666 + $0x188] sm:$0xff] %v592
  %717 = vst [vmem:[%s666 + $0x190] sm:$0xff] %v597
  %718 = vst [vmem:[%s666 + $0x198] sm:$0xff] %v602
  %719 = vst [vmem:[%s666 + $0x1a0] sm:$0xff] %v607
  %720 = vst [vmem:[%s666 + $0x1a8] sm:$0xff] %v612
  %721 = vst [vmem:[%s666 + $0x1b0] sm:$0xff] %v617
  %722 = vst [vmem:[%s666 + $0x1b8] sm:$0xff] %v622
  %723 = vst [vmem:[%s666 + $0x1c0] sm:$0xff] %v627
  %724 = vst [vmem:[%s666 + $0x1c8] sm:$0xff] %v632
  %725 = vst [vmem:[%s666 + $0x1d0] sm:$0xff] %v637
  %726 = vst [vmem:[%s666 + $0x1d8] sm:$0xff] %v642
  %727 = vst [vmem:[%s666 + $0x1e0] sm:$0xff] %v647
  %728 = vst [vmem:[%s666 + $0x1e8] sm:$0xff] %v652
  %729 = vst [vmem:[%s666 + $0x1f0] sm:$0xff] %v657
  %730 = vst [vmem:[%s666 + $0x1f8] sm:$0xff] %v662
  %p731 = scmp.eq.s32.totalorder 0, 0
  // Predicated region
  $region14: #{conv_batch_norm.1} parent=0 // pred_check
    %p732 = pneg %p731
  $region15: #{conv_batch_norm.1} parent=0 // pred_check_branch
    %734 = sbr.rel (%p732) target = $region17
  $region16: #{conv_batch_norm.1} parent=0 // pred_region
    %v735 = vld [vmem:[%s3] sm:$0xff]
    %v736 = vld [vmem:[%s3 + $0x8] sm:$0xff]
    %v737 = vld [vmem:[%s3 + $0x10] sm:$0xff]
    %v738 = vld [vmem:[%s3 + $0x18] sm:$0xff]
    %v739 = vld [vmem:[%s3 + $0x20] sm:$0xff]
    %v740 = vld [vmem:[%s3 + $0x28] sm:$0xff]
    %v741 = vld [vmem:[%s3 + $0x30] sm:$0xff]
    %v742 = vld [vmem:[%s3 + $0x38] sm:$0xff]
    %v743 = vld [vmem:[%s3 + $0x40] sm:$0xff]
    %v744 = vld [vmem:[%s3 + $0x48] sm:$0xff]
    %v745 = vld [vmem:[%s3 + $0x50] sm:$0xff]
    %v746 = vld [vmem:[%s3 + $0x58] sm:$0xff]
    %v747 = vld [vmem:[%s3 + $0x60] sm:$0xff]
    %v748 = vld [vmem:[%s3 + $0x68] sm:$0xff]
    %v749 = vld [vmem:[%s3 + $0x70] sm:$0xff]
    %v750 = vld [vmem:[%s3 + $0x78] sm:$0xff]
    %v751 = vld [vmem:[%s3 + $0x80] sm:$0xff]
    %v752 = vld [vmem:[%s3 + $0x88] sm:$0xff]
    %v753 = vld [vmem:[%s3 + $0x90] sm:$0xff]
    %v754 = vld [vmem:[%s3 + $0x98] sm:$0xff]
    %v755 = vld [vmem:[%s3 + $0xa0] sm:$0xff]
    %v756 = vld [vmem:[%s3 + $0xa8] sm:$0xff]
    %v757 = vld [vmem:[%s3 + $0xb0] sm:$0xff]
    %v758 = vld [vmem:[%s3 + $0xb8] sm:$0xff]
    %v759 = vld [vmem:[%s3 + $0xc0] sm:$0xff]
    %v760 = vld [vmem:[%s3 + $0xc8] sm:$0xff]
    %v761 = vld [vmem:[%s3 + $0xd0] sm:$0xff]
    %v762 = vld [vmem:[%s3 + $0xd8] sm:$0xff]
    %v763 = vld [vmem:[%s3 + $0xe0] sm:$0xff]
    %v764 = vld [vmem:[%s3 + $0xe8] sm:$0xff]
    %v765 = vld [vmem:[%s3 + $0xf0] sm:$0xff]
    %v766 = vld [vmem:[%s3 + $0xf8] sm:$0xff]
    %v767 = vld [vmem:[%s3 + $0x100] sm:$0xff]
    %v768 = vld [vmem:[%s3 + $0x108] sm:$0xff]
    %v769 = vld [vmem:[%s3 + $0x110] sm:$0xff]
    %v770 = vld [vmem:[%s3 + $0x118] sm:$0xff]
    %v771 = vld [vmem:[%s3 + $0x120] sm:$0xff]
    %v772 = vld [vmem:[%s3 + $0x128] sm:$0xff]
    %v773 = vld [vmem:[%s3 + $0x130] sm:$0xff]
    %v774 = vld [vmem:[%s3 + $0x138] sm:$0xff]
    %v775 = vld [vmem:[%s3 + $0x140] sm:$0xff]
    %v776 = vld [vmem:[%s3 + $0x148] sm:$0xff]
    %v777 = vld [vmem:[%s3 + $0x150] sm:$0xff]
    %v778 = vld [vmem:[%s3 + $0x158] sm:$0xff]
    %v779 = vld [vmem:[%s3 + $0x160] sm:$0xff]
    %v780 = vld [vmem:[%s3 + $0x168] sm:$0xff]
    %v781 = vld [vmem:[%s3 + $0x170] sm:$0xff]
    %v782 = vld [vmem:[%s3 + $0x178] sm:$0xff]
    %v783 = vld [vmem:[%s3 + $0x180] sm:$0xff]
    %v784 = vld [vmem:[%s3 + $0x188] sm:$0xff]
    %v785 = vld [vmem:[%s3 + $0x190] sm:$0xff]
    %v786 = vld [vmem:[%s3 + $0x198] sm:$0xff]
    %v787 = vld [vmem:[%s3 + $0x1a0] sm:$0xff]
    %v788 = vld [vmem:[%s3 + $0x1a8] sm:$0xff]
    %v789 = vld [vmem:[%s3 + $0x1b0] sm:$0xff]
    %v790 = vld [vmem:[%s3 + $0x1b8] sm:$0xff]
    %v791 = vld [vmem:[%s3 + $0x1c0] sm:$0xff]
    %v792 = vld [vmem:[%s3 + $0x1c8] sm:$0xff]
    %v793 = vld [vmem:[%s3 + $0x1d0] sm:$0xff]
    %v794 = vld [vmem:[%s3 + $0x1d8] sm:$0xff]
    %v795 = vld [vmem:[%s3 + $0x1e0] sm:$0xff]
    %v796 = vld [vmem:[%s3 + $0x1e8] sm:$0xff]
    %v797 = vld [vmem:[%s3 + $0x1f0] sm:$0xff]
    %v798 = vld [vmem:[%s3 + $0x1f8] sm:$0xff]
    %v799 = vadd.f32 %v735, %v736
    %v800 = vadd.f32 %v799, %v737
    %v801 = vadd.f32 %v800, %v738
    %v802 = vadd.f32 %v801, %v739
    %v803 = vadd.f32 %v802, %v740
    %v804 = vadd.f32 %v803, %v741
    %v805 = vadd.f32 %v804, %v742
    %v806 = vadd.f32 %v805, %v743
    %v807 = vadd.f32 %v806, %v744
    %v808 = vadd.f32 %v807, %v745
    %v809 = vadd.f32 %v808, %v746
    %v810 = vadd.f32 %v809, %v747
    %v811 = vadd.f32 %v810, %v748
    %v812 = vadd.f32 %v811, %v749
    %v813 = vadd.f32 %v812, %v750
    %v814 = vadd.f32 %v813, %v751
    %v815 = vadd.f32 %v814, %v752
    %v816 = vadd.f32 %v815, %v753
    %v817 = vadd.f32 %v816, %v754
    %v818 = vadd.f32 %v817, %v755
    %v819 = vadd.f32 %v818, %v756
    %v820 = vadd.f32 %v819, %v757
    %v821 = vadd.f32 %v820, %v758
    %v822 = vadd.f32 %v821, %v759
    %v823 = vadd.f32 %v822, %v760
    %v824 = vadd.f32 %v823, %v761
    %v825 = vadd.f32 %v824, %v762
    %v826 = vadd.f32 %v825, %v763
    %v827 = vadd.f32 %v826, %v764
    %v828 = vadd.f32 %v827, %v765
    %v829 = vadd.f32 %v828, %v766
    %v830 = vadd.f32 %v829, %v767
    %v831 = vadd.f32 %v830, %v768
    %v832 = vadd.f32 %v831, %v769
    %v833 = vadd.f32 %v832, %v770
    %v834 = vadd.f32 %v833, %v771
    %v835 = vadd.f32 %v834, %v772
    %v836 = vadd.f32 %v835, %v773
    %v837 = vadd.f32 %v836, %v774
    %v838 = vadd.f32 %v837, %v775
    %v839 = vadd.f32 %v838, %v776
    %v840 = vadd.f32 %v839, %v777
    %v841 = vadd.f32 %v840, %v778
    %v842 = vadd.f32 %v841, %v779
    %v843 = vadd.f32 %v842, %v780
    %v844 = vadd.f32 %v843, %v781
    %v845 = vadd.f32 %v844, %v782
    %v846 = vadd.f32 %v845, %v783
    %v847 = vadd.f32 %v846, %v784
    %v848 = vadd.f32 %v847, %v785
    %v849 = vadd.f32 %v848, %v786
    %v850 = vadd.f32 %v849, %v787
    %v851 = vadd.f32 %v850, %v788
    %v852 = vadd.f32 %v851, %v789
    %v853 = vadd.f32 %v852, %v790
    %v854 = vadd.f32 %v853, %v791
    %v855 = vadd.f32 %v854, %v792
    %v856 = vadd.f32 %v855, %v793
    %v857 = vadd.f32 %v856, %v794
    %v858 = vadd.f32 %v857, %v795
    %v859 = vadd.f32 %v858, %v796
    %v860 = vadd.f32 %v859, %v797
    %v861 = vadd.f32 %v860, %v798
    %v862 = vrot.slane %v861, 4
    %v863 = vadd.f32 %v861, %v862
    %v864 = vrot.slane %v863, 2
    %v865 = vadd.f32 %v863, %v864
    %v866 = vrot.slane %v865, 1
    %v867 = vadd.f32 %v865, %v866
    %v868 = vmul.f32 %v867, 0.001953125
    %v869 = vsub.f32 %v735, %v868
    %v870 = vsub.f32 %v736, %v868
    %v871 = vsub.f32 %v737, %v868
    %v872 = vsub.f32 %v738, %v868
    %v873 = vsub.f32 %v739, %v868
    %v874 = vsub.f32 %v740, %v868
    %v875 = vsub.f32 %v741, %v868
    %v876 = vsub.f32 %v742, %v868
    %v877 = vsub.f32 %v743, %v868
    %v878 = vsub.f32 %v744, %v868
    %v879 = vsub.f32 %v745, %v868
    %v880 = vsub.f32 %v746, %v868
    %v881 = vsub.f32 %v747, %v868
    %v882 = vsub.f32 %v748, %v868
    %v883 = vsub.f32 %v749, %v868
    %v884 = vsub.f32 %v750, %v868
    %v885 = vsub.f32 %v751, %v868
    %v886 = vsub.f32 %v752, %v868
    %v887 = vsub.f32 %v753, %v868
    %v888 = vsub.f32 %v754, %v868
    %v889 = vsub.f32 %v755, %v868
    %v890 = vsub.f32 %v756, %v868
    %v891 = vsub.f32 %v757, %v868
    %v892 = vsub.f32 %v758, %v868
    %v893 = vsub.f32 %v759, %v868
    %v894 = vsub.f32 %v760, %v868
    %v895 = vsub.f32 %v761, %v868
    %v896 = vsub.f32 %v762, %v868
    %v897 = vsub.f32 %v763, %v868
    %v898 = vsub.f32 %v764, %v868
    %v899 = vsub.f32 %v765, %v868
    %v900 = vsub.f32 %v766, %v868
    %v901 = vsub.f32 %v767, %v868
    %v902 = vsub.f32 %v768, %v868
    %v903 = vsub.f32 %v769, %v868
    %v904 = vsub.f32 %v770, %v868
    %v905 = vsub.f32 %v771, %v868
    %v906 = vsub.f32 %v772, %v868
    %v907 = vsub.f32 %v773, %v868
    %v908 = vsub.f32 %v774, %v868
    %v909 = vsub.f32 %v775, %v868
    %v910 = vsub.f32 %v776, %v868
    %v911 = vsub.f32 %v777, %v868
    %v912 = vsub.f32 %v778, %v868
    %v913 = vsub.f32 %v779, %v868
    %v914 = vsub.f32 %v780, %v868
    %v915 = vsub.f32 %v781, %v868
    %v916 = vsub.f32 %v782, %v868
    %v917 = vsub.f32 %v783, %v868
    %v918 = vsub.f32 %v784, %v868
    %v919 = vsub.f32 %v785, %v868
    %v920 = vsub.f32 %v786, %v868
    %v921 = vsub.f32 %v787, %v868
    %v922 = vsub.f32 %v788, %v868
    %v923 = vsub.f32 %v789, %v868
    %v924 = vsub.f32 %v790, %v868
    %v925 = vsub.f32 %v791, %v868
    %v926 = vsub.f32 %v792, %v868
    %v927 = vsub.f32 %v793, %v868
    %v928 = vsub.f32 %v794, %v868
    %v929 = vsub.f32 %v795, %v868
    %v930 = vsub.f32 %v796, %v868
    %v931 = vsub.f32 %v797, %v868
    %v932 = vsub.f32 %v798, %v868
    %v933 = vmul.f32 %v869, %v869
    %v934 = vmul.f32 %v870, %v870
    %v935 = vmul.f32 %v871, %v871
    %v936 = vmul.f32 %v872, %v872
    %v937 = vmul.f32 %v873, %v873
    %v938 = vmul.f32 %v874, %v874
    %v939 = vmul.f32 %v875, %v875
    %v940 = vmul.f32 %v876, %v876
    %v941 = vmul.f32 %v877, %v877
    %v942 = vmul.f32 %v878, %v878
    %v943 = vmul.f32 %v879, %v879
    %v944 = vmul.f32 %v880, %v880
    %v945 = vmul.f32 %v881, %v881
    %v946 = vmul.f32 %v882, %v882
    %v947 = vmul.f32 %v883, %v883
    %v948 = vmul.f32 %v884, %v884
    %v949 = vmul.f32 %v885, %v885
    %v950 = vmul.f32 %v886, %v886
    %v951 = vmul.f32 %v887, %v887
    %v952 = vmul.f32 %v888, %v888
    %v953 = vmul.f32 %v889, %v889
    %v954 = vmul.f32 %v890, %v890
    %v955 = vmul.f32 %v891, %v891
    %v956 = vmul.f32 %v892, %v892
    %v957 = vmul.f32 %v893, %v893
    %v958 = vmul.f32 %v894, %v894
    %v959 = vmul.f32 %v895, %v895
    %v960 = vmul.f32 %v896, %v896
    %v961 = vmul.f32 %v897, %v897
    %v962 = vmul.f32 %v898, %v898
    %v963 = vmul.f32 %v899, %v899
    %v964 = vmul.f32 %v900, %v900
    %v965 = vmul.f32 %v901, %v901
    %v966 = vmul.f32 %v902, %v902
    %v967 = vmul.f32 %v903, %v903
    %v968 = vmul.f32 %v904, %v904
    %v969 = vmul.f32 %v905, %v905
    %v970 = vmul.f32 %v906, %v906
    %v971 = vmul.f32 %v907, %v907
    %v972 = vmul.f32 %v908, %v908
    %v973 = vmul.f32 %v909, %v909
    %v974 = vmul.f32 %v910, %v910
    %v975 = vmul.f32 %v911, %v911
    %v976 = vmul.f32 %v912, %v912
    %v977 = vmul.f32 %v913, %v913
    %v978 = vmul.f32 %v914, %v914
    %v979 = vmul.f32 %v915, %v915
    %v980 = vmul.f32 %v916, %v916
    %v981 = vmul.f32 %v917, %v917
    %v982 = vmul.f32 %v918, %v918
    %v983 = vmul.f32 %v919, %v919
    %v984 = vmul.f32 %v920, %v920
    %v985 = vmul.f32 %v921, %v921
    %v986 = vmul.f32 %v922, %v922
    %v987 = vmul.f32 %v923, %v923
    %v988 = vmul.f32 %v924, %v924
    %v989 = vmul.f32 %v925, %v925
    %v990 = vmul.f32 %v926, %v926
    %v991 = vmul.f32 %v927, %v927
    %v992 = vmul.f32 %v928, %v928
    %v993 = vmul.f32 %v929, %v929
    %v994 = vmul.f32 %v930, %v930
    %v995 = vmul.f32 %v931, %v931
    %v996 = vmul.f32 %v932, %v932
    %v997 = vadd.f32 %v933, %v934
    %v998 = vadd.f32 %v997, %v935
    %v999 = vadd.f32 %v998, %v936
    %v1000 = vadd.f32 %v999, %v937
    %v1001 = vadd.f32 %v1000, %v938
    %v1002 = vadd.f32 %v1001, %v939
    %v1003 = vadd.f32 %v1002, %v940
    %v1004 = vadd.f32 %v1003, %v941
    %v1005 = vadd.f32 %v1004, %v942
    %v1006 = vadd.f32 %v1005, %v943
    %v1007 = vadd.f32 %v1006, %v944
    %v1008 = vadd.f32 %v1007, %v945
    %v1009 = vadd.f32 %v1008, %v946
    %v1010 = vadd.f32 %v1009, %v947
    %v1011 = vadd.f32 %v1010, %v948
    %v1012 = vadd.f32 %v1011, %v949
    %v1013 = vadd.f32 %v1012, %v950
    %v1014 = vadd.f32 %v1013, %v951
    %v1015 = vadd.f32 %v1014, %v952
    %v1016 = vadd.f32 %v1015, %v953
    %v1017 = vadd.f32 %v1016, %v954
    %v1018 = vadd.f32 %v1017, %v955
    %v1019 = vadd.f32 %v1018, %v956
    %v1020 = vadd.f32 %v1019, %v957
    %v1021 = vadd.f32 %v1020, %v958
    %v1022 = vadd.f32 %v1021, %v959
    %v1023 = vadd.f32 %v1022, %v960
    %v1024 = vadd.f32 %v1023, %v961
    %v1025 = vadd.f32 %v1024, %v962
    %v1026 = vadd.f32 %v1025, %v963
    %v1027 = vadd.f32 %v1026, %v964
    %v1028 = vadd.f32 %v1027, %v965
    %v1029 = vadd.f32 %v1028, %v966
    %v1030 = vadd.f32 %v1029, %v967
    %v1031 = vadd.f32 %v1030, %v968
    %v1032 = vadd.f32 %v1031, %v969
    %v1033 = vadd.f32 %v1032, %v970
    %v1034 = vadd.f32 %v1033, %v971
    %v1035 = vadd.f32 %v1034, %v972
    %v1036 = vadd.f32 %v1035, %v973
    %v1037 = vadd.f32 %v1036, %v974
    %v1038 = vadd.f32 %v1037, %v975
    %v1039 = vadd.f32 %v1038, %v976
    %v1040 = vadd.f32 %v1039, %v977
    %v1041 = vadd.f32 %v1040, %v978
    %v1042 = vadd.f32 %v1041, %v979
    %v1043 = vadd.f32 %v1042, %v980
    %v1044 = vadd.f32 %v1043, %v981
    %v1045 = vadd.f32 %v1044, %v982
    %v1046 = vadd.f32 %v1045, %v983
    %v1047 = vadd.f32 %v1046, %v984
    %v1048 = vadd.f32 %v1047, %v985
    %v1049 = vadd.f32 %v1048, %v986
    %v1050 = vadd.f32 %v1049, %v987
    %v1051 = vadd.f32 %v1050, %v988
    %v1052 = vadd.f32 %v1051, %v989
    %v1053 = vadd.f32 %v1052, %v990
    %v1054 = vadd.f32 %v1053, %v991
    %v1055 = vadd.f32 %v1054, %v992
    %v1056 = vadd.f32 %v1055, %v993
    %v1057 = vadd.f32 %v1056, %v994
    %v1058 = vadd.f32 %v1057, %v995
    %v1059 = vadd.f32 %v1058, %v996
    %v1060 = vrot.slane %v1059, 4
    %v1061 = vadd.f32 %v1059, %v1060
    %v1062 = vrot.slane %v1061, 2
    %v1063 = vadd.f32 %v1061, %v1062
    %v1064 = vrot.slane %v1063, 1
    %v1065 = vadd.f32 %v1063, %v1064
    %v1066 = vmul.f32 %v1065, 0.001953125
    %v1067 = vadd.f32 %v1066, 1e-05
    %v1068 = vrsqrt.pop %v1067
    %v1069 = vld [vmem:[%s2] sm:$0x1]
    %v1070 = vmul.f32 %v1069, %v1068
    %v1071 = vlaneseq
    %v1072 = vshrl.u32 %v1071, 7
    %v1073 = vsub.s32 0, %v1072
    %v1074 = vrot.slane %v1070, %v1073
    %v1075 = vmul.f32 %v869, %v1074
    %v1076 = vmul.f32 %v870, %v1074
    %v1077 = vmul.f32 %v871, %v1074
    %v1078 = vmul.f32 %v872, %v1074
    %v1079 = vmul.f32 %v873, %v1074
    %v1080 = vmul.f32 %v874, %v1074
    %v1081 = vmul.f32 %v875, %v1074
    %v1082 = vmul.f32 %v876, %v1074
    %v1083 = vmul.f32 %v877, %v1074
    %v1084 = vmul.f32 %v878, %v1074
    %v1085 = vmul.f32 %v879, %v1074
    %v1086 = vmul.f32 %v880, %v1074
    %v1087 = vmul.f32 %v881, %v1074
    %v1088 = vmul.f32 %v882, %v1074
    %v1089 = vmul.f32 %v883, %v1074
    %v1090 = vmul.f32 %v884, %v1074
    %v1091 = vmul.f32 %v885, %v1074
    %v1092 = vmul.f32 %v886, %v1074
    %v1093 = vmul.f32 %v887, %v1074
    %v1094 = vmul.f32 %v888, %v1074
    %v1095 = vmul.f32 %v889, %v1074
    %v1096 = vmul.f32 %v890, %v1074
    %v1097 = vmul.f32 %v891, %v1074
    %v1098 = vmul.f32 %v892, %v1074
    %v1099 = vmul.f32 %v893, %v1074
    %v1100 = vmul.f32 %v894, %v1074
    %v1101 = vmul.f32 %v895, %v1074
    %v1102 = vmul.f32 %v896, %v1074
    %v1103 = vmul.f32 %v897, %v1074
    %v1104 = vmul.f32 %v898, %v1074
    %v1105 = vmul.f32 %v899, %v1074
    %v1106 = vmul.f32 %v900, %v1074
    %v1107 = vmul.f32 %v901, %v1074
    %v1108 = vmul.f32 %v902, %v1074
    %v1109 = vmul.f32 %v903, %v1074
    %v1110 = vmul.f32 %v904, %v1074
    %v1111 = vmul.f32 %v905, %v1074
    %v1112 = vmul.f32 %v906, %v1074
    %v1113 = vmul.f32 %v907, %v1074
    %v1114 = vmul.f32 %v908, %v1074
    %v1115 = vmul.f32 %v909, %v1074
    %v1116 = vmul.f32 %v910, %v1074
    %v1117 = vmul.f32 %v911, %v1074
    %v1118 = vmul.f32 %v912, %v1074
    %v1119 = vmul.f32 %v913, %v1074
    %v1120 = vmul.f32 %v914, %v1074
    %v1121 = vmul.f32 %v915, %v1074
    %v1122 = vmul.f32 %v916, %v1074
    %v1123 = vmul.f32 %v917, %v1074
    %v1124 = vmul.f32 %v918, %v1074
    %v1125 = vmul.f32 %v919, %v1074
    %v1126 = vmul.f32 %v920, %v1074
    %v1127 = vmul.f32 %v921, %v1074
    %v1128 = vmul.f32 %v922, %v1074
    %v1129 = vmul.f32 %v923, %v1074
    %v1130 = vmul.f32 %v924, %v1074
    %v1131 = vmul.f32 %v925, %v1074
    %v1132 = vmul.f32 %v926, %v1074
    %v1133 = vmul.f32 %v927, %v1074
    %v1134 = vmul.f32 %v928, %v1074
    %v1135 = vmul.f32 %v929, %v1074
    %v1136 = vmul.f32 %v930, %v1074
    %v1137 = vmul.f32 %v931, %v1074
    %v1138 = vmul.f32 %v932, %v1074
    %v1139 = vld [vmem:[%s2 + $0x1] sm:$0x1]
    %v1140 = vlaneseq
    %v1141 = vshrl.u32 %v1140, 7
    %v1142 = vsub.s32 0, %v1141
    %v1143 = vrot.slane %v1139, %v1142
    %v1144 = vadd.f32 %v1075, %v1143
    %v1145 = vadd.f32 %v1076, %v1143
    %v1146 = vadd.f32 %v1077, %v1143
    %v1147 = vadd.f32 %v1078, %v1143
    %v1148 = vadd.f32 %v1079, %v1143
    %v1149 = vadd.f32 %v1080, %v1143
    %v1150 = vadd.f32 %v1081, %v1143
    %v1151 = vadd.f32 %v1082, %v1143
    %v1152 = vadd.f32 %v1083, %v1143
    %v1153 = vadd.f32 %v1084, %v1143
    %v1154 = vadd.f32 %v1085, %v1143
    %v1155 = vadd.f32 %v1086, %v1143
    %v1156 = vadd.f32 %v1087, %v1143
    %v1157 = vadd.f32 %v1088, %v1143
    %v1158 = vadd.f32 %v1089, %v1143
    %v1159 = vadd.f32 %v1090, %v1143
    %v1160 = vadd.f32 %v1091, %v1143
    %v1161 = vadd.f32 %v1092, %v1143
    %v1162 = vadd.f32 %v1093, %v1143
    %v1163 = vadd.f32 %v1094, %v1143
    %v1164 = vadd.f32 %v1095, %v1143
    %v1165 = vadd.f32 %v1096, %v1143
    %v1166 = vadd.f32 %v1097, %v1143
    %v1167 = vadd.f32 %v1098, %v1143
    %v1168 = vadd.f32 %v1099, %v1143
    %v1169 = vadd.f32 %v1100, %v1143
    %v1170 = vadd.f32 %v1101, %v1143
    %v1171 = vadd.f32 %v1102, %v1143
    %v1172 = vadd.f32 %v1103, %v1143
    %v1173 = vadd.f32 %v1104, %v1143
    %v1174 = vadd.f32 %v1105, %v1143
    %v1175 = vadd.f32 %v1106, %v1143
    %v1176 = vadd.f32 %v1107, %v1143
    %v1177 = vadd.f32 %v1108, %v1143
    %v1178 = vadd.f32 %v1109, %v1143
    %v1179 = vadd.f32 %v1110, %v1143
    %v1180 = vadd.f32 %v1111, %v1143
    %v1181 = vadd.f32 %v1112, %v1143
    %v1182 = vadd.f32 %v1113, %v1143
    %v1183 = vadd.f32 %v1114, %v1143
    %v1184 = vadd.f32 %v1115, %v1143
    %v1185 = vadd.f32 %v1116, %v1143
    %v1186 = vadd.f32 %v1117, %v1143
    %v1187 = vadd.f32 %v1118, %v1143
    %v1188 = vadd.f32 %v1119, %v1143
    %v1189 = vadd.f32 %v1120, %v1143
    %v1190 = vadd.f32 %v1121, %v1143
    %v1191 = vadd.f32 %v1122, %v1143
    %v1192 = vadd.f32 %v1123, %v1143
    %v1193 = vadd.f32 %v1124, %v1143
    %v1194 = vadd.f32 %v1125, %v1143
    %v1195 = vadd.f32 %v1126, %v1143
    %v1196 = vadd.f32 %v1127, %v1143
    %v1197 = vadd.f32 %v1128, %v1143
    %v1198 = vadd.f32 %v1129, %v1143
    %v1199 = vadd.f32 %v1130, %v1143
    %v1200 = vadd.f32 %v1131, %v1143
    %v1201 = vadd.f32 %v1132, %v1143
    %v1202 = vadd.f32 %v1133, %v1143
    %v1203 = vadd.f32 %v1134, %v1143
    %v1204 = vadd.f32 %v1135, %v1143
    %v1205 = vadd.f32 %v1136, %v1143
    %v1206 = vadd.f32 %v1137, %v1143
    %v1207 = vadd.f32 %v1138, %v1143
    %v1208 = vmax.f32 %v1144, 0.0
    %v1209 = vmax.f32 %v1145, 0.0
    %v1210 = vmax.f32 %v1146, 0.0
    %v1211 = vmax.f32 %v1147, 0.0
    %v1212 = vmax.f32 %v1148, 0.0
    %v1213 = vmax.f32 %v1149, 0.0
    %v1214 = vmax.f32 %v1150, 0.0
    %v1215 = vmax.f32 %v1151, 0.0
    %v1216 = vmax.f32 %v1152, 0.0
    %v1217 = vmax.f32 %v1153, 0.0
    %v1218 = vmax.f32 %v1154, 0.0
    %v1219 = vmax.f32 %v1155, 0.0
    %v1220 = vmax.f32 %v1156, 0.0
    %v1221 = vmax.f32 %v1157, 0.0
    %v1222 = vmax.f32 %v1158, 0.0
    %v1223 = vmax.f32 %v1159, 0.0
    %v1224 = vmax.f32 %v1160, 0.0
    %v1225 = vmax.f32 %v1161, 0.0
    %v1226 = vmax.f32 %v1162, 0.0
    %v1227 = vmax.f32 %v1163, 0.0
    %v1228 = vmax.f32 %v1164, 0.0
    %v1229 = vmax.f32 %v1165, 0.0
    %v1230 = vmax.f32 %v1166, 0.0
    %v1231 = vmax.f32 %v1167, 0.0
    %v1232 = vmax.f32 %v1168, 0.0
    %v1233 = vmax.f32 %v1169, 0.0
    %v1234 = vmax.f32 %v1170, 0.0
    %v1235 = vmax.f32 %v1171, 0.0
    %v1236 = vmax.f32 %v1172, 0.0
    %v1237 = vmax.f32 %v1173, 0.0
    %v1238 = vmax.f32 %v1174, 0.0
    %v1239 = vmax.f32 %v1175, 0.0
    %v1240 = vmax.f32 %v1176, 0.0
    %v1241 = vmax.f32 %v1177, 0.0
    %v1242 = vmax.f32 %v1178, 0.0
    %v1243 = vmax.f32 %v1179, 0.0
    %v1244 = vmax.f32 %v1180, 0.0
    %v1245 = vmax.f32 %v1181, 0.0
    %v1246 = vmax.f32 %v1182, 0.0
    %v1247 = vmax.f32 %v1183, 0.0
    %v1248 = vmax.f32 %v1184, 0.0
    %v1249 = vmax.f32 %v1185, 0.0
    %v1250 = vmax.f32 %v1186, 0.0
    %v1251 = vmax.f32 %v1187, 0.0
    %v1252 = vmax.f32 %v1188, 0.0
    %v1253 = vmax.f32 %v1189, 0.0
    %v1254 = vmax.f32 %v1190, 0.0
    %v1255 = vmax.f32 %v1191, 0.0
    %v1256 = vmax.f32 %v1192, 0.0
    %v1257 = vmax.f32 %v1193, 0.0
    %v1258 = vmax.f32 %v1194, 0.0
    %v1259 = vmax.f32 %v1195, 0.0
    %v1260 = vmax.f32 %v1196, 0.0
    %v1261 = vmax.f32 %v1197, 0.0
    %v1262 = vmax.f32 %v1198, 0.0
    %v1263 = vmax.f32 %v1199, 0.0
    %v1264 = vmax.f32 %v1200, 0.0
    %v1265 = vmax.f32 %v1201, 0.0
    %v1266 = vmax.f32 %v1202, 0.0
    %v1267 = vmax.f32 %v1203, 0.0
    %v1268 = vmax.f32 %v1204, 0.0
    %v1269 = vmax.f32 %v1205, 0.0
    %v1270 = vmax.f32 %v1206, 0.0
    %v1271 = vmax.f32 %v1207, 0.0
    %1272 = vst [vmem:[%s3] sm:$0xff] %v1208
    %1273 = vst [vmem:[%s3 + $0x8] sm:$0xff] %v1209
    %1274 = vst [vmem:[%s3 + $0x10] sm:$0xff] %v1210
    %1275 = vst [vmem:[%s3 + $0x18] sm:$0xff] %v1211
    %1276 = vst [vmem:[%s3 + $0x20] sm:$0xff] %v1212
    %1277 = vst [vmem:[%s3 + $0x28] sm:$0xff] %v1213
    %1278 = vst [vmem:[%s3 + $0x30] sm:$0xff] %v1214
    %1279 = vst [vmem:[%s3 + $0x38] sm:$0xff] %v1215
    %1280 = vst [vmem:[%s3 + $0x40] sm:$0xff] %v1216
    %1281 = vst [vmem:[%s3 + $0x48] sm:$0xff] %v1217
    %1282 = vst [vmem:[%s3 + $0x50] sm:$0xff] %v1218
    %1283 = vst [vmem:[%s3 + $0x58] sm:$0xff] %v1219
    %1284 = vst [vmem:[%s3 + $0x60] sm:$0xff] %v1220
    %1285 = vst [vmem:[%s3 + $0x68] sm:$0xff] %v1221
    %1286 = vst [vmem:[%s3 + $0x70] sm:$0xff] %v1222
    %1287 = vst [vmem:[%s3 + $0x78] sm:$0xff] %v1223
    %1288 = vst [vmem:[%s3 + $0x80] sm:$0xff] %v1224
    %1289 = vst [vmem:[%s3 + $0x88] sm:$0xff] %v1225
    %1290 = vst [vmem:[%s3 + $0x90] sm:$0xff] %v1226
    %1291 = vst [vmem:[%s3 + $0x98] sm:$0xff] %v1227
    %1292 = vst [vmem:[%s3 + $0xa0] sm:$0xff] %v1228
    %1293 = vst [vmem:[%s3 + $0xa8] sm:$0xff] %v1229
    %1294 = vst [vmem:[%s3 + $0xb0] sm:$0xff] %v1230
    %1295 = vst [vmem:[%s3 + $0xb8] sm:$0xff] %v1231
    %1296 = vst [vmem:[%s3 + $0xc0] sm:$0xff] %v1232
    %1297 = vst [vmem:[%s3 + $0xc8] sm:$0xff] %v1233
    %1298 = vst [vmem:[%s3 + $0xd0] sm:$0xff] %v1234
    %1299 = vst [vmem:[%s3 + $0xd8] sm:$0xff] %v1235
    %1300 = vst [vmem:[%s3 + $0xe0] sm:$0xff] %v1236
    %1301 = vst [vmem:[%s3 + $0xe8] sm:$0xff] %v1237
    %1302 = vst [vmem:[%s3 + $0xf0] sm:$0xff] %v1238
    %1303 = vst [vmem:[%s3 + $0xf8] sm:$0xff] %v1239
    %1304 = vst [vmem:[%s3 + $0x100] sm:$0xff] %v1240
    %1305 = vst [vmem:[%s3 + $0x108] sm:$0xff] %v1241
    %1306 = vst [vmem:[%s3 + $0x110] sm:$0xff] %v1242
    %1307 = vst [vmem:[%s3 + $0x118] sm:$0xff] %v1243
    %1308 = vst [vmem:[%s3 + $0x120] sm:$0xff] %v1244
    %1309 = vst [vmem:[%s3 + $0x128] sm:$0xff] %v1245
    %1310 = vst [vmem:[%s3 + $0x130] sm:$0xff] %v1246
    %1311 = vst [vmem:[%s3 + $0x138] sm:$0xff] %v1247
    %1312 = vst [vmem:[%s3 + $0x140] sm:$0xff] %v1248
    %1313 = vst [vmem:[%s3 + $0x148] sm:$0xff] %v1249
    %1314 = vst [vmem:[%s3 + $0x150] sm:$0xff] %v1250
    %1315 = vst [vmem:[%s3 + $0x158] sm:$0xff] %v1251
    %1316 = vst [vmem:[%s3 + $0x160] sm:$0xff] %v1252
    %1317 = vst [vmem:[%s3 + $0x168] sm:$0xff] %v1253
    %1318 = vst [vmem:[%s3 + $0x170] sm:$0xff] %v1254
    %1319 = vst [vmem:[%s3 + $0x178] sm:$0xff] %v1255
    %1320 = vst [vmem:[%s3 + $0x180] sm:$0xff] %v1256
    %1321 = vst [vmem:[%s3 + $0x188] sm:$0xff] %v1257
    %1322 = vst [vmem:[%s3 + $0x190] sm:$0xff] %v1258
    %1323 = vst [vmem:[%s3 + $0x198] sm:$0xff] %v1259
    %1324 = vst [vmem:[%s3 + $0x1a0] sm:$0xff] %v1260
    %1325 = vst [vmem:[%s3 + $0x1a8] sm:$0xff] %v1261
    %1326 = vst [vmem:[%s3 + $0x1b0] sm:$0xff] %v1262
    %1327 = vst [vmem:[%s3 + $0x1b8] sm:$0xff] %v1263
    %1328 = vst [vmem:[%s3 + $0x1c0] sm:$0xff] %v1264
    %1329 = vst [vmem:[%s3 + $0x1c8] sm:$0xff] %v1265
    %1330 = vst [vmem:[%s3 + $0x1d0] sm:$0xff] %v1266
    %1331 = vst [vmem:[%s3 + $0x1d8] sm:$0xff] %v1267
    %1332 = vst [vmem:[%s3 + $0x1e0] sm:$0xff] %v1268
    %1333 = vst [vmem:[%s3 + $0x1e8] sm:$0xff] %v1269
    %1334 = vst [vmem:[%s3 + $0x1f0] sm:$0xff] %v1270
    %1335 = vst [vmem:[%s3 + $0x1f8] sm:$0xff] %v1271
  $region17: #{conv_batch_norm.1} parent=0 // pred_fallthru
    _
  // Predicated region
  $region18: #{conv_batch_norm.1} parent=0 // pred_check
    _
  $region19: #{conv_batch_norm.1} parent=0 // pred_check_branch
    %1337 = sbr.rel (0) target = $region21
  $region20: #{conv_batch_norm.1} parent=0 // pred_region
    _
  $region21: #{conv_batch_norm.1} parent=0 // pred_fallthru
    _
  // Predicated region
  $region22: #{conv_batch_norm.1} parent=0 // pred_check
    _
  $region23: #{conv_batch_norm.1} parent=0 // pred_check_branch
    %1339 = sbr.rel (0) target = $region25
  $region24: #{conv_batch_norm.1} parent=0 // pred_region
    _
  $region25: #{conv_batch_norm.1} parent=0 // pred_fallthru
    _

</llo_original>
